<compile_context>
chip_gen: v6e
topology: v6e:2x2x1
jax: 0.10.0
libtpu: 0.0.40
codegen_flags: <defaults>
</compile_context>

<pallas_src>
import jax
import jax.numpy as jnp
from jax.experimental import pallas as pl
from jax.experimental.pallas import tpu as pltpu

FACTOR = 8.0
ALPHA = -10.0
LANES = 128
SUBLANES = 8
MAX_TILE_ROWS = 1024


def _cdiv(a, b):
    return (a + b - 1) // b


def _round_up(v, m):
    return _cdiv(v, m) * m


def _loss_kernel(x_ref, w_ref, out_ref):
    """One (tile_r, 128) tile -> one lane-dense (8, 128) partial sum."""
    x = x_ref[...]          # (tile_r, 128) f32  L1 joint error (padding = 0)
    w = w_ref[...]          # (tile_r, 128) f32  target weight  (padding = 0)

    # ((x/8)^2 / |alpha-2| + 1)^(alpha/2) - 1 with alpha = -10 -> exponent -5.
    b = (x * (1.0 / FACTOR)) ** 2 * (1.0 / abs(ALPHA - 2.0)) + 1.0      # b >= 1

    # 1/b via the EUP approximate reciprocal (free bundle slot) plus two Newton
    # refinements (rel err ~1e-12, tolerance risk gone).  Raising the refined
    # reciprocal to the 5th power (instead of recip(b^5)) avoids overflow->NaN
    # for extreme joint/gt separations.
    r = pl.reciprocal(b, approx=True)
    r = r * (2.0 - b * r)
    r = r * (2.0 - b * r)
    r2 = r * r
    r5 = r2 * r2 * r                       # b^(alpha/2) = b^-5
    x_scaled = r5 - 1.0
    x_final = ((abs(ALPHA) - 2.0) / ALPHA) * x_scaled

    # Joints with weight < 0.5 (and the zero padding, which has w == 0)
    # contribute exactly 0 to the sum.
    loss = jnp.where(w < 0.5, 0.0, x_final)

    # Reduce the tile to a single vreg-sized (8, 128) partial.  Grouping rows
    # in chunks of 8 keeps the reduction as plain VPU adds (layout-trivial
    # major-dim reshape, no cross-lane traffic); the one cross-lane/sublane
    # reduce happens once, in the wrapper epilogue.
    out_ref[...] = jnp.sum(loss.reshape(-1, SUBLANES, LANES), axis=0)


def joint2d_smooth_loss(joint_2d, gt, target_weight=None):
    """joint_2d, gt: (N, J, 2); target_weight: (N, J, 1) or None. Returns scalar."""
    N, J, two = joint_2d.shape
    assert two == 2
    total = N * J

    # Review option (a): compute the coordinate-pair L1 in the wrapper fusion
    # so the kernel only streams two lane-dense planes.
    # TODO(synk): review option (b) (feed joint_2d/gt in native interleaved
    # layout and pair-sum in-kernel via pltpu.roll + lane-parity mask) would
    # cut another ~8 B/joint but requires expanding the weight plane into the
    # interleaved layout; not worth it at realistic joint counts.
    x = jnp.sum(
        jnp.abs(joint_2d.astype(jnp.float32) - gt.astype(jnp.float32)), axis=2
    ).reshape(-1)

    if target_weight is None:
        w = jnp.ones((total,), jnp.float32)
    else:
        # torch.squeeze drops ALL size-1 dims; for the documented (N, J, 1)
        # shape this reshape is equivalent (differs only for degenerate N/J==1).
        w = target_weight.reshape(total).astype(jnp.float32)

    rows = _cdiv(total, LANES)
    # Aim for >= 2 row-tiles when there is enough work so the "parallel" grid
    # axis can feed both v7x TensorCores; cap the tile for VMEM headroom on
    # v5e (16 MiB scoped default) / v7x (64 MiB physical).
    tile_r = min(MAX_TILE_ROWS, max(SUBLANES, _round_up(_cdiv(rows, 2), SUBLANES)))
    num_tiles = _cdiv(rows, tile_r)
    r_pad = num_tiles * tile_r
    pad = r_pad * LANES - total
    if pad:
        x = jnp.pad(x, (0, pad))       # padded x = 0, w = 0 -> exactly 0 loss
        w = jnp.pad(w, (0, pad))
    x = x.reshape(r_pad, LANES)
    w = w.reshape(r_pad, LANES)

    partials = pl.pallas_call(
        _loss_kernel,
        out_shape=jax.ShapeDtypeStruct((num_tiles * SUBLANES, LANES), jnp.float32),
        grid_spec=pltpu.PrefetchScalarGridSpec(
            num_scalar_prefetch=0,
            grid=(num_tiles,),
            in_specs=[
                pl.BlockSpec((tile_r, LANES), lambda i: (i, 0)),
                pl.BlockSpec((tile_r, LANES), lambda i: (i, 0)),
            ],
            out_specs=pl.BlockSpec((SUBLANES, LANES), lambda i: (i, 0)),
        ),
        # Each tile writes its own lane-dense partial block -> no carried
        # accumulator, so the (single) grid axis is fully parallel.
        compiler_params=pltpu.CompilerParams(dimension_semantics=("parallel",)),
    )(x, w)

    # Tiny epilogue: one cross-lane/sublane reduce over <= num_tiles vregs,
    # the true mean divisor (padding contributed 0) and the *1000 factor.
    return jnp.sum(partials) * (1000.0 / float(total))


def _reference(joint_2d, gt, target_weight):
    x = jnp.sum(jnp.abs(joint_2d - gt), axis=2)
    x_scaled = ((x / FACTOR) ** 2 / abs(ALPHA - 2.0) + 1.0) ** (ALPHA * 0.5) - 1.0
    x_final = (abs(ALPHA) - 2.0) / ALPHA * x_scaled
    loss = x_final
    if target_weight is not None:
        cond = jnp.squeeze(target_weight, axis=-1) < 0.5
        loss = jnp.where(cond, jnp.zeros_like(loss), loss)
    return jnp.mean(loss) * 1000.0


if __name__ == "__main__":
    # N = batch * nview = 16, J = njoint = 16
    N, J = 16, 16
    key = jax.random.PRNGKey(0)
    k1, k2, k3 = jax.random.split(key, 3)

    joint_2d = jax.random.normal(k1, (N, J, 2), dtype=jnp.float32) * 10.0
    gt = joint_2d + jax.random.normal(k2, (N, J, 2), dtype=jnp.float32) * 3.0
    target_weight = (jax.random.uniform(k3, (N, J, 1)) > 0.2).astype(jnp.float32)

    out = jax.block_until_ready(joint2d_smooth_loss(joint_2d, gt, target_weight))
    ref = _reference(joint_2d, gt, target_weight)
    assert jnp.allclose(out, ref, rtol=1e-4, atol=1e-4), (out, ref)

    # target_weight=None path.
    out2 = jax.block_until_ready(joint2d_smooth_loss(joint_2d, gt, None))
    ref2 = _reference(joint_2d, gt, None)
    assert jnp.allclose(out2, ref2, rtol=1e-4, atol=1e-4), (out2, ref2)

    # Larger, non-multiple-of-128 shape: exercises zero padding and the
    # 2-tile "parallel" partial-sum path (v7x megacore split).
    N2, J2 = 128, 17
    k4, k5, k6 = jax.random.split(jax.random.PRNGKey(1), 3)
    j2 = jax.random.normal(k4, (N2, J2, 2), dtype=jnp.float32) * 50.0
    g2 = j2 + jax.random.normal(k5, (N2, J2, 2), dtype=jnp.float32) * 5.0
    w2 = (jax.random.uniform(k6, (N2, J2, 1)) > 0.3).astype(jnp.float32)
    out3 = jax.block_until_ready(joint2d_smooth_loss(j2, g2, w2))
    ref3 = _reference(j2, g2, w2)
    assert jnp.allclose(out3, ref3, rtol=1e-4, atol=1e-4), (out3, ref3)

    print("KERNEL_OK")
</pallas_src>

<mosaic_0001>
module attributes {stable_mosaic.version = 11 : i64} {
  func.func @_loss_kernel(%arg0: i32, %arg1: memref<8x128xf32, #tpu.memory_space<vmem>>, %arg2: memref<8x128xf32, #tpu.memory_space<vmem>>, %arg3: memref<8x128xf32, #tpu.memory_space<vmem>>) attributes {dimension_semantics = [#tpu.dimension_semantics<parallel>], iteration_bounds = array<i64: 1>, scalar_prefetch = 0 : i64, scratch_operands = 0 : i64, tpu.core_type = #tpu.core_type<tc>, window_params = [{transform_indices = @transform_0, window_bounds = array<i64: 8, 128>}, {transform_indices = @transform_1, window_bounds = array<i64: 8, 128>}, {transform_indices = @transform_2, window_bounds = array<i64: 8, 128>}]} {
    %c0 = arith.constant 0 : index
    %c0_0 = arith.constant 0 : index
    %0 = vector.load %arg1[%c0, %c0_0] : memref<8x128xf32, #tpu.memory_space<vmem>>, vector<8x128xf32>
    %c0_1 = arith.constant 0 : index
    %c0_2 = arith.constant 0 : index
    %1 = vector.load %arg2[%c0_1, %c0_2] : memref<8x128xf32, #tpu.memory_space<vmem>>, vector<8x128xf32>
    %cst = arith.constant 1.250000e-01 : f32
    %2 = vector.broadcast %cst : f32 to vector<8x128xf32>
    %3 = arith.mulf %0, %2 : vector<8x128xf32>
    %4 = arith.mulf %3, %3 : vector<8x128xf32>
    %cst_3 = arith.constant 0.0833333358 : f32
    %5 = vector.broadcast %cst_3 : f32 to vector<8x128xf32>
    %6 = arith.mulf %4, %5 : vector<8x128xf32>
    %cst_4 = arith.constant 1.000000e+00 : f32
    %7 = vector.broadcast %cst_4 : f32 to vector<8x128xf32>
    %8 = arith.addf %6, %7 : vector<8x128xf32>
    %9 = tpu.reciprocal %8 {approx = true} : vector<8x128xf32> -> vector<8x128xf32>
    %10 = arith.mulf %8, %9 : vector<8x128xf32>
    %cst_5 = arith.constant 2.000000e+00 : f32
    %11 = vector.broadcast %cst_5 : f32 to vector<8x128xf32>
    %12 = arith.subf %11, %10 : vector<8x128xf32>
    %13 = arith.mulf %9, %12 : vector<8x128xf32>
    %14 = arith.mulf %8, %13 : vector<8x128xf32>
    %cst_6 = arith.constant 2.000000e+00 : f32
    %15 = vector.broadcast %cst_6 : f32 to vector<8x128xf32>
    %16 = arith.subf %15, %14 : vector<8x128xf32>
    %17 = arith.mulf %13, %16 : vector<8x128xf32>
    %18 = arith.mulf %17, %17 : vector<8x128xf32>
    %19 = arith.mulf %18, %18 : vector<8x128xf32>
    %20 = arith.mulf %19, %17 : vector<8x128xf32>
    %cst_7 = arith.constant 1.000000e+00 : f32
    %21 = vector.broadcast %cst_7 : f32 to vector<8x128xf32>
    %22 = arith.subf %20, %21 : vector<8x128xf32>
    %cst_8 = arith.constant -8.000000e-01 : f32
    %23 = vector.broadcast %cst_8 : f32 to vector<8x128xf32>
    %24 = arith.mulf %23, %22 : vector<8x128xf32>
    %cst_9 = arith.constant 5.000000e-01 : f32
    %25 = vector.broadcast %cst_9 : f32 to vector<8x128xf32>
    %26 = arith.cmpf olt, %1, %25 : vector<8x128xf32>
    %cst_10 = arith.constant 0.000000e+00 : f32
    %27 = vector.broadcast %cst_10 : f32 to vector<8x128xf32>
    %28 = arith.select %26, %27, %24 : vector<8x128xi1>, vector<8x128xf32>
    %29 = vector.shape_cast %28 : vector<8x128xf32> to vector<1x8x128xf32>
    %cst_11 = arith.constant dense<0.000000e+00> : vector<8x128xf32>
    %30 = vector.multi_reduction <add>, %29, %cst_11 [0] : vector<1x8x128xf32> to vector<8x128xf32>
    %c0_12 = arith.constant 0 : index
    %c0_13 = arith.constant 0 : index
    %31 = vector.load %arg3[%c0_12, %c0_13] : memref<8x128xf32, #tpu.memory_space<vmem>>, vector<8x128xf32>
    tpu.vector_store %arg3[%c0_12, %c0_13], %30 {strides = array<i32>} : memref<8x128xf32, #tpu.memory_space<vmem>>, vector<8x128xf32>,
    return
  }
  func.func @transform_0(%arg0: i32) -> (i32, i32) {
    %c0_i32 = arith.constant 0 : i32
    %c0_i32_0 = arith.constant 0 : i32
    return %arg0, %c0_i32 : i32, i32
  }
  func.func @transform_1(%arg0: i32) -> (i32, i32) {
    %c0_i32 = arith.constant 0 : i32
    %c0_i32_0 = arith.constant 0 : i32
    return %arg0, %c0_i32 : i32, i32
  }
  func.func @transform_2(%arg0: i32) -> (i32, i32) {
    %c0_i32 = arith.constant 0 : i32
    %c0_i32_0 = arith.constant 0 : i32
    return %arg0, %c0_i32 : i32, i32
  }
}

</mosaic_0001>

<llo_original>
// kernel: tpu_custom_call.1
$region0: #{tpu_custom_call.1}
  #allocation0 [shape = 'u32[]', space=smem, size = 0x4, offset = 0x4, fixed_abs, tag = 'smem constant byte address 0x4 - core index']
  #allocation1 [shape = 'u32[144,128]{1,0:T(1,128)}', space=vmem, size = 0x12000, scoped, tag = 'internal scratch']
  %s0 = inlined_call_operand.hbm [shape: f32[8,128], index: 0, kind: input, shape index: {}]
  %s1 = inlined_call_operand.hbm [shape: f32[8,128], index: 1, kind: input, shape index: {}]
  %s2 = inlined_call_operand.hbm [shape: f32[8,128], index: 2, kind: output, shape index: {}]
  %s3 = sld [smem:[#allocation0]]
  $region26: #{tpu_custom_call.1} parent=0
    _
  %s5 = ssub.s32 1, %s3
  %s6 = scalar_select 0, %s5, %s3
  $region1: #{tpu_custom_call.1} parent=0
    #allocation2 [shape = 'u8[4096]{0}', space=vmem, size = 0x1000, scoped, tag = 'input window, operand 0, single buffered']
    #allocation3 [shape = 's32[1]{0}', space=sflag, size = 0x4, scoped, tag = 'scoped memory for tpu_custom_call.1']
    #allocation4 [shape = 's32[1]{0}', space=sflag, size = 0x4, scoped, tag = 'scoped memory for tpu_custom_call.1']
    #allocation5 [shape = 'u8[4096]{0}', space=vmem, size = 0x1000, scoped, tag = 'input window, operand 1, single buffered']
    #allocation6 [shape = 's32[1]{0}', space=sflag, size = 0x4, scoped, tag = 'scoped memory for tpu_custom_call.1']
    #allocation7 [shape = 'u8[4096]{0}', space=vmem, size = 0x1000, scoped, tag = 'output window, operand 0, single buffered']
    %7 = vsyncpa [#allocation3], 0
    %8 = vsyncpa [#allocation6], 0
    %9 = vsyncpa [#allocation4], 0
    // Predicated region
    $region2: #{tpu_custom_call.1} parent=1 // pred_check
      _
    $region3: #{tpu_custom_call.1} parent=1 // pred_check_branch
      %11 = sbr.rel (0) target = $region5
    $region4: #{tpu_custom_call.1} parent=1 // pred_region
      %s13 = ssub.s32 128, 128
      %14 = vsyncadd [#allocation3], %s13
      %s16 = sshll.u32 [#allocation2], 4
      %s17 = int_to_ptr.vmem [resolvable:$true] %s16
      %19 = dma.hbm_to_vmem [thread:$0]  %s0, 128, %s17, [#allocation3]
    $region5: #{tpu_custom_call.1} parent=1 // pred_fallthru
      _
    // Predicated region
    $region6: #{tpu_custom_call.1} parent=1 // pred_check
      _
    $region7: #{tpu_custom_call.1} parent=1 // pred_check_branch
      %21 = sbr.rel (0) target = $region9
    $region8: #{tpu_custom_call.1} parent=1 // pred_region
      %s23 = ssub.s32 128, 128
      %24 = vsyncadd [#allocation6], %s23
      %s26 = sshll.u32 [#allocation5], 4
      %s27 = int_to_ptr.vmem [resolvable:$true] %s26
      %29 = dma.hbm_to_vmem [thread:$0]  %s1, 128, %s27, [#allocation6]
    $region9: #{tpu_custom_call.1} parent=1 // pred_fallthru
      _
    // Predicated region
    $region10: #{tpu_custom_call.1} parent=1 // pred_check
      _
    $region11: #{tpu_custom_call.1} parent=1 // pred_check_branch
      %31 = sbr.rel (0) target = $region13
    $region12: #{tpu_custom_call.1} parent=1 // pred_region
      %32 = dma.done [#allocation3], 128
    $region13: #{tpu_custom_call.1} parent=1 // pred_fallthru
      _
    // Predicated region
    $region14: #{tpu_custom_call.1} parent=1 // pred_check
      _
    $region15: #{tpu_custom_call.1} parent=1 // pred_check_branch
      %34 = sbr.rel (0) target = $region17
    $region16: #{tpu_custom_call.1} parent=1 // pred_region
      %35 = dma.done [#allocation6], 128
    $region17: #{tpu_custom_call.1} parent=1 // pred_fallthru
      _
    %v36 = vld [vmem:[#allocation2] sm:$0xff]
    %v37 = vld [vmem:[#allocation5] sm:$0xff]
    %v38 = vmul.f32 %v36, 0.125
    %v39 = vmul.f32 %v38, %v38
    %v40 = vmul.f32 %v39, 0.083333336
    %v41 = vadd.f32 %v40, 1.0
    %v42 = vrcp.pop %v41
    %v43 = vmul.f32 %v41, %v42
    %v44 = vsub.f32 2.0, %v43
    %v45 = vmul.f32 %v42, %v44
    %v46 = vmul.f32 %v41, %v45
    %v47 = vsub.f32 2.0, %v46
    %v48 = vmul.f32 %v45, %v47
    %v49 = vmul.f32 %v48, %v48
    %v50 = vmul.f32 %v49, %v49
    %v51 = vmul.f32 %v50, %v48
    %v52 = vsub.f32 %v51, 1.0
    %v53 = vmul.f32 %v52, -0.8
    %vm54 = vcmp.lt.f32.partialorder %v37, 0.5
    %v55 = vsel %vm54, 0.0, %v53
    %v56 = vadd.f32 %v55, 0.0
    %57 = vst [vmem:[#allocation7] sm:$0xff] %v56
    // Predicated region
    $region18: #{tpu_custom_call.1} parent=1 // pred_check
      _
    $region19: #{tpu_custom_call.1} parent=1 // pred_check_branch
      %59 = sbr.rel (0) target = $region21
    $region20: #{tpu_custom_call.1} parent=1 // pred_region
      %s61 = ssub.s32 128, 128
      %62 = vsyncadd [#allocation4], %s61
      %s64 = sshll.u32 [#allocation7], 4
      %s65 = int_to_ptr.vmem [resolvable:$true] %s64
      %67 = dma.vmem_to_hbm [thread:$0]  %s65, 128, %s2, [#allocation4]
    $region21: #{tpu_custom_call.1} parent=1 // pred_fallthru
      _
    // Predicated region
    $region22: #{tpu_custom_call.1} parent=1 // pred_check
      _
    $region23: #{tpu_custom_call.1} parent=1 // pred_check_branch
      %69 = sbr.rel (0) target = $region25
    $region24: #{tpu_custom_call.1} parent=1 // pred_region
      %70 = dma.done [#allocation4], 128
    $region25: #{tpu_custom_call.1} parent=1 // pred_fallthru
      _
    %71 = vsyncpa [#allocation3], 1
    %72 = vsyncpa [#allocation6], 1
    %73 = vsyncpa [#allocation4], 1

</llo_original>
